<compile_context>
chip_gen: v7x
topology: tpu7x:2x2x1
jax: 0.10.0
libtpu: 0.0.40
codegen_flags: <defaults>
</compile_context>

<pallas_src>
import functools

import jax
import jax.numpy as jnp
from jax.experimental import pallas as pl
from jax.experimental.pallas import tpu as pltpu

EPS = 1e-6


# ----------------------------------------------------------------------------
# Counter-based RNG pieces (shared by kernel, host table and reference).
# ----------------------------------------------------------------------------
def _fmix32(h):
    """32-bit integer finalizer (full avalanche), uint32 in / uint32 out."""
    h = h ^ (h >> 16)
    h = h * jnp.uint32(0x7FEB352D)
    h = h ^ (h >> 15)
    h = h * jnp.uint32(0x846CA68B)
    h = h ^ (h >> 16)
    return h


def _gamma_threshold(drop_prob, block_size, H, W, warmup_iters, iter_cnt):
    """_compute_gamma, resolved host-side into a 24-bit integer threshold."""
    Hm = H - block_size + 1
    Wm = W - block_size + 1
    gamma = drop_prob * H * W / (Hm * Wm) / (block_size * block_size)
    factor = 1.0 if iter_cnt > warmup_iters else iter_cnt / warmup_iters
    gamma *= factor
    thr = int(round(gamma * (1 << 24)))
    return max(0, min(thr, 1 << 24))


def _coord_table(seed, thr, block_size, H, W):
    """Hoisted per-flat-position hash term + validity-folded threshold.

    Returns a (2, Lq) uint32 array:
      row 0: fmix32(seed ^ k * K2) for flat position k (k = row*W + col),
      row 1: 256*thr where the position is a valid Bernoulli seed, else 0
             (unsigned compare h < 0 never passes, so validity is free).
    """
    bs = block_size
    HW = H * W
    Lq = (bs - 1) * W + HW + (bs - 1)
    k = jnp.arange(Lq, dtype=jnp.int32)
    row = k // W
    col = k % W
    valid = (row >= bs - 1) & (row < H) & (col >= bs - 1)       # col < W by construction
    coord = _fmix32(jnp.uint32(seed & 0xFFFFFFFF)
                    ^ (k.astype(jnp.uint32) * jnp.uint32(0x85EBCA77)))
    thr_scaled = min(int(thr) * 256, 0xFFFFFFFF)                # (h>>8)<thr  <=>  h<256*thr
    thrv = jnp.where(valid, jnp.uint32(thr_scaled), jnp.uint32(0))
    return jnp.stack([coord, thrv], axis=0)


# ----------------------------------------------------------------------------
# In-kernel mask generation (flat, lane-dense).
# ----------------------------------------------------------------------------
def _pooled_drop_field(coord, thrv, block_id, *, planes, block_size, H, W):
    """Pooled drop field p (planes, H*W) f32 in {0,1} (1 = inside a dropped block).

    coord, thrv: (1, Lq) uint32 rows of the hoisted table.
    Returns (p, plane) with plane the (planes, 1) int32 global plane indices.
    """
    bs = block_size
    HW = H * W
    plane = block_id * planes + jax.lax.broadcasted_iota(jnp.int32, (planes, 1), 0)
    pm = _fmix32(plane.astype(jnp.uint32) * jnp.uint32(0x9E3779B1))      # (planes, 1)
    h = _fmix32(pm + coord)                                              # (planes, Lq)
    q = jnp.where(h < thrv, jnp.float32(1.0), jnp.float32(0.0))          # Bernoulli seeds

    # Separable stride-1 (bs x bs) max-pool, all as lane-offset maxes.
    Lr = HW + bs - 1
    r = q[:, 0:Lr]
    for di in range(1, bs):
        r = jnp.maximum(r, q[:, di * W: di * W + Lr])
    p = r[:, 0:HW]
    for dj in range(1, bs):
        p = jnp.maximum(p, r[:, dj: dj + HW])
    return p, plane


# ----------------------------------------------------------------------------
# Kernels.
# ----------------------------------------------------------------------------
def _mask_sum_kernel(tbl_ref, psum_ref, *, planes, nc, block_size, H, W):
    coord = tbl_ref[0:1, :]
    thrv = tbl_ref[1:2, :]
    p, plane = _pooled_drop_field(coord, thrv, pl.program_id(0),
                                  planes=planes, block_size=block_size, H=H, W=W)
    # keep-count per plane = H*W - #dropped; mask the ragged-tail planes.
    keep = jnp.float32(H * W) - jnp.sum(p, axis=1, keepdims=True)        # (planes, 1)
    keep = jnp.where(plane < nc, keep, 0.0)
    # Splat onto an aligned (8, 128) tile; host reads element [g, 0, 0].
    psum_ref[...] = jnp.broadcast_to(jnp.sum(keep), (1, 8, 128))


def _apply_kernel(scale_ref, tbl_ref, x_ref, out_ref, *, planes, block_size, H, W):
    coord = tbl_ref[0:1, :]
    thrv = tbl_ref[1:2, :]
    p, _ = _pooled_drop_field(coord, thrv, pl.program_id(0),
                              planes=planes, block_size=block_size, H=H, W=W)
    # Folded finalize + scale; cast to x.dtype before the multiply so bf16
    # inputs stay packed on the VALU / store path.
    m = jnp.where(p > 0.0, jnp.float32(0.0), scale_ref[0]).astype(out_ref.dtype)
    out_ref[...] = x_ref[...] * m


# ----------------------------------------------------------------------------
# Host-side helpers + wrapper.
# ----------------------------------------------------------------------------
def _planes_per_step(nc, hw, itemsize):
    """Planes per grid step: ~2 MiB of x, sized against double-buffered I/O +
    ~5 live f32 flat-field temporaries, floored at 8 (sublane-aligned blocks).
    """
    per_plane = hw * (4 * itemsize + 5 * 4)
    cap = max(1, (28 * 1024 * 1024) // per_plane)
    if cap >= nc:
        return nc
    bt = max(8, (cap // 8) * 8)
    return nc if bt >= nc else bt


def dropblock_forward(x, seed, *, drop_prob, block_size, warmup_iters=2000,
                      iter_cnt=1, training=True, max_planes_per_step=None):
    """Matches DropBlock.forward for a given (post-increment) iteration counter."""
    assert block_size % 2 == 1
    assert 0 < drop_prob <= 1
    assert warmup_iters >= 0
    if not training:
        return x

    N, C, H, W = x.shape
    bs = block_size
    assert H - bs + 1 >= 1 and W - bs + 1 >= 1, "feature map smaller than block"

    thr = _gamma_threshold(drop_prob, bs, H, W, warmup_iters, iter_cnt)

    NC, HW = N * C, H * W
    Lq = (bs - 1) * W + HW + (bs - 1)

    Bt = _planes_per_step(NC, HW, x.dtype.itemsize)
    if max_planes_per_step is not None:
        Bt = min(Bt, int(max_planes_per_step))
        if Bt != NC and Bt % 8 != 0:                 # keep sublane-aligned blocks
            Bt = NC if NC <= 8 else max(8, (Bt // 8) * 8)
    G = pl.cdiv(NC, Bt)

    tbl = _coord_table(seed, thr, bs, H, W)          # (2, Lq) uint32, tiny
    x2 = x.reshape(NC, HW)                           # free, contiguous view

    cparams = pltpu.CompilerParams(
        dimension_semantics=("parallel",),
        vmem_limit_bytes=48 * 1024 * 1024)

    # Pass 1: partial keep-mask sums (mask never touches HBM, x never read).
    sum_kernel = functools.partial(_mask_sum_kernel, planes=Bt, nc=NC,
                                   block_size=bs, H=H, W=W)
    psums = pl.pallas_call(
        sum_kernel,
        grid=(G,),
        in_specs=[pl.BlockSpec((2, Lq), lambda g: (0, 0))],
        out_specs=pl.BlockSpec((1, 8, 128), lambda g: (g, 0, 0)),
        out_shape=jax.ShapeDtypeStruct((G, 8, 128), jnp.float32),
        compiler_params=cparams,
    )(tbl)

    # Hoisted scale: numel / (eps + mask.sum()), computed once.
    mask_sum = jnp.sum(psums[:, 0, 0])
    scale = (float(NC * HW) / (EPS + mask_sum)).astype(jnp.float32).reshape(1)

    # Pass 2: out = x * where(dropped, 0, scale), mask regenerated in-register.
    apply_kernel = functools.partial(_apply_kernel, planes=Bt,
                                     block_size=bs, H=H, W=W)
    out = pl.pallas_call(
        apply_kernel,
        grid=(G,),
        in_specs=[
            pl.BlockSpec(memory_space=pltpu.MemorySpace.SMEM),   # scale (1,) f32
            pl.BlockSpec((2, Lq), lambda g: (0, 0)),             # hoisted hash table
            pl.BlockSpec((Bt, HW), lambda g: (g, 0)),            # x (lane-dense)
        ],
        out_specs=pl.BlockSpec((Bt, HW), lambda g: (g, 0)),
        out_shape=jax.ShapeDtypeStruct((NC, HW), x.dtype),
        compiler_params=cparams,
    )(scale, tbl, x2)

    return out.reshape(N, C, H, W)


# ----------------------------------------------------------------------------
# Pure-JAX (XLA) reference using the same RNG definition but an independent
# 3-D (padded-plane) formulation of the pooling, for verification.
# ----------------------------------------------------------------------------
def _reference_dropblock(x, seed, *, drop_prob, block_size, warmup_iters,
                         iter_cnt):
    N, C, H, W = x.shape
    bs = block_size
    thr = _gamma_threshold(drop_prob, bs, H, W, warmup_iters, iter_cnt)
    thr_scaled = min(int(thr) * 256, 0xFFFFFFFF)
    NC = N * C
    Hq, Wq = H + bs - 1, W + bs - 1

    pid = jax.lax.broadcasted_iota(jnp.int32, (NC, Hq, Wq), 0)
    row = jax.lax.broadcasted_iota(jnp.int32, (NC, Hq, Wq), 1)
    col = jax.lax.broadcasted_iota(jnp.int32, (NC, Hq, Wq), 2)
    valid = (row >= bs - 1) & (row < H) & (col >= bs - 1) & (col < W)

    k = row * W + col
    coord = _fmix32(jnp.uint32(seed & 0xFFFFFFFF)
                    ^ (k.astype(jnp.uint32) * jnp.uint32(0x85EBCA77)))
    pm = _fmix32(pid.astype(jnp.uint32) * jnp.uint32(0x9E3779B1))
    h = _fmix32(pm + coord)
    q = jnp.where(valid & (h < jnp.uint32(thr_scaled)), 1.0, 0.0).astype(jnp.float32)

    r = q[:, 0:H, :]
    for di in range(1, bs):
        r = jnp.maximum(r, q[:, di:di + H, :])
    p = r[:, :, 0:W]
    for dj in range(1, bs):
        p = jnp.maximum(p, r[:, :, dj:dj + W])

    keep = 1.0 - p
    scale = float(NC * H * W) / (EPS + jnp.sum(keep))
    out = x.reshape(NC, H, W) * keep * scale
    return out.astype(x.dtype).reshape(N, C, H, W)


if __name__ == "__main__":
    key = jax.random.PRNGKey(0)
    x = jax.random.normal(key, (2, 4, 16, 16), dtype=jnp.float32)

    # Iteration past warmup so the drop is fully active (factor == 1.0).
    kwargs = dict(drop_prob=0.3, block_size=3, warmup_iters=2000, iter_cnt=2001)

    out = dropblock_forward(x, seed=0, training=True, **kwargs)
    out = jax.block_until_ready(out)

    assert out.shape == x.shape and out.dtype == x.dtype
    assert bool(jnp.all(jnp.isfinite(out)))
    assert bool(jnp.any(out == 0.0))      # some blocks were actually dropped
    assert bool(jnp.any(out != 0.0))      # ... but not everything

    ref = _reference_dropblock(x, 0, **kwargs)
    assert bool(jnp.allclose(out, ref, rtol=1e-5, atol=1e-5))

    # Ragged / multi-step grid path: NC=12 planes processed 8 per grid step
    # (exercises the cdiv grid, masked tail planes and OOB write masking).
    x2 = jax.random.normal(jax.random.PRNGKey(1), (3, 4, 16, 16), dtype=jnp.float32)
    out2 = dropblock_forward(x2, seed=7, training=True, max_planes_per_step=8,
                             **kwargs)
    out2 = jax.block_until_ready(out2)
    ref2 = _reference_dropblock(x2, 7, **kwargs)
    assert bool(jnp.allclose(out2, ref2, rtol=1e-5, atol=1e-5))

    # eval mode is a pass-through
    assert dropblock_forward(x, seed=0, training=False, **kwargs) is x

    print("KERNEL_OK")
</pallas_src>

<mosaic_0001>
module attributes {stable_mosaic.version = 11 : i64} {
  func.func @_mask_sum_kernel(%arg0: i32, %arg1: memref<2x290xi32, #tpu.memory_space<vmem>>, %arg2: memref<1x8x128xf32, #tpu.memory_space<vmem>>) attributes {dimension_semantics = [#tpu.dimension_semantics<parallel>], iteration_bounds = array<i64: 1>, scalar_prefetch = 0 : i64, scratch_operands = 0 : i64, tpu.core_type = #tpu.core_type<tc>, window_params = [{pipeline_mode = #tpu.pipeline_mode<synchronous>, transform_indices = @transform_0, window_bounds = array<i64: 2, 290>}, {transform_indices = @transform_1, window_bounds = array<i64: 1, 8, 128>}]} {
    %c0 = arith.constant 0 : index
    %c0_0 = arith.constant 0 : index
    %0 = vector.load %arg1[%c0, %c0_0] : memref<2x290xi32, #tpu.memory_space<vmem>>, vector<1x290xi32>
    %c1 = arith.constant 1 : index
    %c0_1 = arith.constant 0 : index
    %1 = vector.load %arg1[%c1, %c0_1] : memref<2x290xi32, #tpu.memory_space<vmem>>, vector<1x290xi32>
    %c8_i32 = arith.constant 8 : i32
    %2 = arith.muli %arg0, %c8_i32 : i32
    %3 = tpu.iota {dimensions = array<i32: 0>} : vector<8x1xi32>
    %4 = vector.broadcast %2 : i32 to vector<8x1xi32>
    %5 = arith.addi %4, %3 : vector<8x1xi32>
    %c-1640531535_i32 = arith.constant -1640531535 : i32
    %6 = vector.broadcast %c-1640531535_i32 : i32 to vector<8x1xi32>
    %7 = arith.muli %5, %6 : vector<8x1xi32>
    %c16_i32 = arith.constant 16 : i32
    %8 = vector.broadcast %c16_i32 : i32 to vector<8x1xi32>
    %9 = arith.shrui %7, %8 : vector<8x1xi32>
    %10 = arith.xori %7, %9 : vector<8x1xi32>
    %c2146121005_i32 = arith.constant 2146121005 : i32
    %11 = vector.broadcast %c2146121005_i32 : i32 to vector<8x1xi32>
    %12 = arith.muli %10, %11 : vector<8x1xi32>
    %c15_i32 = arith.constant 15 : i32
    %13 = vector.broadcast %c15_i32 : i32 to vector<8x1xi32>
    %14 = arith.shrui %12, %13 : vector<8x1xi32>
    %15 = arith.xori %12, %14 : vector<8x1xi32>
    %c-2073254261_i32 = arith.constant -2073254261 : i32
    %16 = vector.broadcast %c-2073254261_i32 : i32 to vector<8x1xi32>
    %17 = arith.muli %15, %16 : vector<8x1xi32>
    %c16_i32_2 = arith.constant 16 : i32
    %18 = vector.broadcast %c16_i32_2 : i32 to vector<8x1xi32>
    %19 = arith.shrui %17, %18 : vector<8x1xi32>
    %20 = arith.xori %17, %19 : vector<8x1xi32>
    %21 = vector.broadcast %20 : vector<8x1xi32> to vector<8x290xi32>
    %22 = vector.broadcast %0 : vector<1x290xi32> to vector<8x290xi32>
    %23 = arith.addi %21, %22 : vector<8x290xi32>
    %c16_i32_3 = arith.constant 16 : i32
    %24 = vector.broadcast %c16_i32_3 : i32 to vector<8x290xi32>
    %25 = arith.shrui %23, %24 : vector<8x290xi32>
    %26 = arith.xori %23, %25 : vector<8x290xi32>
    %c2146121005_i32_4 = arith.constant 2146121005 : i32
    %27 = vector.broadcast %c2146121005_i32_4 : i32 to vector<8x290xi32>
    %28 = arith.muli %26, %27 : vector<8x290xi32>
    %c15_i32_5 = arith.constant 15 : i32
    %29 = vector.broadcast %c15_i32_5 : i32 to vector<8x290xi32>
    %30 = arith.shrui %28, %29 : vector<8x290xi32>
    %31 = arith.xori %28, %30 : vector<8x290xi32>
    %c-2073254261_i32_6 = arith.constant -2073254261 : i32
    %32 = vector.broadcast %c-2073254261_i32_6 : i32 to vector<8x290xi32>
    %33 = arith.muli %31, %32 : vector<8x290xi32>
    %c16_i32_7 = arith.constant 16 : i32
    %34 = vector.broadcast %c16_i32_7 : i32 to vector<8x290xi32>
    %35 = arith.shrui %33, %34 : vector<8x290xi32>
    %36 = arith.xori %33, %35 : vector<8x290xi32>
    %37 = vector.broadcast %1 : vector<1x290xi32> to vector<8x290xi32>
    %38 = arith.cmpi ult, %36, %37 : vector<8x290xi32>
    %cst = arith.constant 1.000000e+00 : f32
    %cst_8 = arith.constant 0.000000e+00 : f32
    %39 = vector.broadcast %cst : f32 to vector<8x290xf32>
    %40 = vector.broadcast %cst_8 : f32 to vector<8x290xf32>
    %41 = arith.select %38, %39, %40 : vector<8x290xi1>, vector<8x290xf32>
    %42 = vector.extract_strided_slice %41 {offsets = [0, 0], sizes = [8, 258], strides = [1, 1]} : vector<8x290xf32> to vector<8x258xf32>
    %43 = vector.extract_strided_slice %41 {offsets = [0, 16], sizes = [8, 258], strides = [1, 1]} : vector<8x290xf32> to vector<8x258xf32>
    %44 = arith.maximumf %42, %43 : vector<8x258xf32>
    %45 = vector.extract_strided_slice %41 {offsets = [0, 32], sizes = [8, 258], strides = [1, 1]} : vector<8x290xf32> to vector<8x258xf32>
    %46 = arith.maximumf %44, %45 : vector<8x258xf32>
    %47 = vector.extract_strided_slice %46 {offsets = [0, 0], sizes = [8, 256], strides = [1, 1]} : vector<8x258xf32> to vector<8x256xf32>
    %48 = vector.extract_strided_slice %46 {offsets = [0, 1], sizes = [8, 256], strides = [1, 1]} : vector<8x258xf32> to vector<8x256xf32>
    %49 = arith.maximumf %47, %48 : vector<8x256xf32>
    %50 = vector.extract_strided_slice %46 {offsets = [0, 2], sizes = [8, 256], strides = [1, 1]} : vector<8x258xf32> to vector<8x256xf32>
    %51 = arith.maximumf %49, %50 : vector<8x256xf32>
    %cst_9 = arith.constant dense<0.000000e+00> : vector<8xf32>
    %52 = vector.multi_reduction <add>, %51, %cst_9 [1] : vector<8x256xf32> to vector<8xf32>
    %53 = vector.shape_cast %52 : vector<8xf32> to vector<8x1xf32>
    %cst_10 = arith.constant 2.560000e+02 : f32
    %54 = vector.broadcast %cst_10 : f32 to vector<8x1xf32>
    %55 = arith.subf %54, %53 : vector<8x1xf32>
    %c8_i32_11 = arith.constant 8 : i32
    %56 = vector.broadcast %c8_i32_11 : i32 to vector<8x1xi32>
    %57 = arith.cmpi slt, %5, %56 : vector<8x1xi32>
    %cst_12 = arith.constant 0.000000e+00 : f32
    %58 = vector.broadcast %cst_12 : f32 to vector<8x1xf32>
    %59 = arith.select %57, %55, %58 : vector<8x1xi1>, vector<8x1xf32>
    %60 = vector.shape_cast %59 : vector<8x1xf32> to vector<1x8x1xf32>
    %cst_13 = arith.constant dense<0.000000e+00> : vector<1xf32>
    %61 = vector.multi_reduction <add>, %60, %cst_13 [1, 2] : vector<1x8x1xf32> to vector<1xf32>
    %62 = vector.shape_cast %61 : vector<1xf32> to vector<1x1x1xf32>
    %63 = vector.extract %62[0, 0, 0] : f32 from vector<1x1x1xf32>
    %64 = vector.broadcast %63 : f32 to vector<1x8x128xf32>
    %c0_14 = arith.constant 0 : index
    %c0_15 = arith.constant 0 : index
    %c0_16 = arith.constant 0 : index
    %65 = vector.load %arg2[%c0_14, %c0_15, %c0_16] : memref<1x8x128xf32, #tpu.memory_space<vmem>>, vector<1x8x128xf32>
    tpu.vector_store %arg2[%c0_14, %c0_15, %c0_16], %64 {strides = array<i32>} : memref<1x8x128xf32, #tpu.memory_space<vmem>>, vector<1x8x128xf32>,
    return
  }
  func.func @transform_0(%arg0: i32) -> (i32, i32) {
    %c0_i32 = arith.constant 0 : i32
    %c0_i32_0 = arith.constant 0 : i32
    %c0_i32_1 = arith.constant 0 : i32
    return %c0_i32, %c0_i32_0 : i32, i32
  }
  func.func @transform_1(%arg0: i32) -> (i32, i32, i32) {
    %c0_i32 = arith.constant 0 : i32
    %c0_i32_0 = arith.constant 0 : i32
    %c0_i32_1 = arith.constant 0 : i32
    return %arg0, %c0_i32, %c0_i32_0 : i32, i32, i32
  }
}

</mosaic_0001>

<llo_original>
// kernel: tpu_custom_call.1
$region0: #{tpu_custom_call.1}
  #allocation0 [shape = 'u32[]', space=smem, size = 0x4, offset = 0x4, fixed_abs, tag = 'smem constant byte address 0x4 - core index']
  #allocation1 [shape = 'u32[144,128]{1,0:T(1,128)}', space=vmem, size = 0x12000, scoped, tag = 'internal scratch']
  %s0 = inlined_call_operand.hbm [shape: u32[2,290], index: 0, kind: input, shape index: {}]
  %s1 = inlined_call_operand.hbm [shape: f32[1,8,128], index: 1, kind: output, shape index: {}]
  %s2 = sld [smem:[#allocation0]]
  $region18: #{tpu_custom_call.1} parent=0
    _
  %s4 = ssub.s32 1, %s2
  %s5 = scalar_select 0, %s4, %s2
  $region1: #{tpu_custom_call.1} parent=0
    #allocation2 [shape = 'u8[3072]{0}', space=vmem, size = 0xc00, scoped, tag = 'input window, operand 0, single buffered']
    #allocation3 [shape = 's32[1]{0}', space=sflag, size = 0x4, scoped, tag = 'scoped memory for tpu_custom_call.1']
    #allocation4 [shape = 's32[1]{0}', space=sflag, size = 0x4, scoped, tag = 'scoped memory for tpu_custom_call.1']
    #allocation5 [shape = 'u8[4096]{0}', space=vmem, size = 0x1000, scoped, tag = 'output window, operand 0, single buffered']
    %6 = vsyncpa [#allocation3], 0
    %7 = vsyncpa [#allocation4], 0
    // Predicated region
    $region2: #{tpu_custom_call.1} parent=1 // pred_check
      _
    $region3: #{tpu_custom_call.1} parent=1 // pred_check_branch
      %9 = sbr.rel (0) target = $region5
    $region4: #{tpu_custom_call.1} parent=1 // pred_region
      %s11 = ssub.s32 96, 96
      %12 = vsyncadd [#allocation3], %s11
      %s14 = sshll.u32 [#allocation2], 4
      %s15 = int_to_ptr.vmem [resolvable:$true] %s14
      %17 = dma.hbm_to_vmem [thread:$0]  %s0, 96, %s15, [#allocation3]
    $region5: #{tpu_custom_call.1} parent=1 // pred_fallthru
      _
    // Predicated region
    $region6: #{tpu_custom_call.1} parent=1 // pred_check
      _
    $region7: #{tpu_custom_call.1} parent=1 // pred_check_branch
      %19 = sbr.rel (0) target = $region9
    $region8: #{tpu_custom_call.1} parent=1 // pred_region
      %20 = dma.done [#allocation3], 96
    $region9: #{tpu_custom_call.1} parent=1 // pred_fallthru
      _
    %v21 = vld [vmem:[#allocation2] ss:$2 sm:$0x7]
    %s22 = scalar_lea.vmem [#allocation2], 1
    %v23 = vld [vmem:[%s22] ss:$2 sm:$0x7]
    %s24 = smul.u32 0, 8
    %v25 = vlaneseq
    %v26 = vshrl.u32 %v25, 7
    %v27 = vstv %s24
    %v28 = vadd.s32 %v27, %v26
    %v29 = vmul.u32 %v28, 2654435761
    %v30 = vshrl.u32 %v29, 16
    %v31 = vxor.u32 %v29, %v30
    %v32 = vmul.u32 %v31, 2146121005
    %v33 = vshrl.u32 %v32, 15
    %v34 = vxor.u32 %v32, %v33
    %v35 = vmul.u32 %v34, 2221713035
    %v36 = vshrl.u32 %v35, 16
    %v37 = vxor.u32 %v35, %v36
    %v38 = vlaneseq
    %v39 = vshrl.u32 %v38, 7
    %v40 = vsub.s32 0, %v39
    %v41 = vrot.slane %v21, %v40
    %v42 = vlaneseq
    %v43 = vshrl.u32 %v42, 7
    %v44 = vsub.s32 1, %v43
    %v45 = vrot.slane %v21, %v44
    %v46 = vlaneseq
    %v47 = vshrl.u32 %v46, 7
    %v48 = vsub.s32 2, %v47
    %v49 = vrot.slane %v21, %v48
    %v50 = vadd.s32 %v37, %v41
    %v51 = vadd.s32 %v37, %v45
    %v52 = vadd.s32 %v37, %v49
    %v53 = vshrl.u32 %v50, 16
    %v54 = vshrl.u32 %v51, 16
    %v55 = vshrl.u32 %v52, 16
    %v56 = vxor.u32 %v50, %v53
    %v57 = vxor.u32 %v51, %v54
    %v58 = vxor.u32 %v52, %v55
    %v59 = vmul.u32 %v56, 2146121005
    %v60 = vmul.u32 %v57, 2146121005
    %v61 = vmul.u32 %v58, 2146121005
    %v62 = vshrl.u32 %v59, 15
    %v63 = vshrl.u32 %v60, 15
    %v64 = vshrl.u32 %v61, 15
    %v65 = vxor.u32 %v59, %v62
    %v66 = vxor.u32 %v60, %v63
    %v67 = vxor.u32 %v61, %v64
    %v68 = vmul.u32 %v65, 2221713035
    %v69 = vmul.u32 %v66, 2221713035
    %v70 = vmul.u32 %v67, 2221713035
    %v71 = vshrl.u32 %v68, 16
    %v72 = vshrl.u32 %v69, 16
    %v73 = vshrl.u32 %v70, 16
    %v74 = vxor.u32 %v68, %v71
    %v75 = vxor.u32 %v69, %v72
    %v76 = vxor.u32 %v70, %v73
    %v77 = vlaneseq
    %v78 = vshrl.u32 %v77, 7
    %v79 = vsub.s32 0, %v78
    %v80 = vrot.slane %v23, %v79
    %v81 = vlaneseq
    %v82 = vshrl.u32 %v81, 7
    %v83 = vsub.s32 1, %v82
    %v84 = vrot.slane %v23, %v83
    %v85 = vlaneseq
    %v86 = vshrl.u32 %v85, 7
    %v87 = vsub.s32 2, %v86
    %v88 = vrot.slane %v23, %v87
    %vm89 = vcmp.lt.u32.totalorder %v74, %v80
    %vm90 = vcmp.lt.u32.totalorder %v75, %v84
    %vm91 = vcmp.lt.u32.totalorder %v76, %v88
    %v92 = vsel %vm89, 1.0, 0.0
    %v93 = vsel %vm90, 1.0, 0.0
    %v94 = vsel %vm91, 1.0, 0.0
    %98 = vrot.lane.b32.xlu0 %v92, 112
    %v99 = vpop.permute.xlu0 %98
    %100 = vrot.lane.b32.xlu0 %v93, 112
    %v101 = vpop.permute.xlu0 %100
    %102 = vrot.lane.b32.xlu0 %v94, 112
    %v103 = vpop.permute.xlu0 %102
    %vm104 = vcmask 916480
    %v105 = vsel %vm104, %v99, %v101
    %v106 = vsel %vm104, %v101, %v103
    %v110 = vmax.f32 %v92, %v105
    %v111 = vmax.f32 %v93, %v106
    %v112 = vmax.f32 %v94, %v103
    %113 = vrot.lane.b32.xlu0 %v92, 96
    %v114 = vpop.permute.xlu0 %113
    %115 = vrot.lane.b32.xlu0 %v93, 96
    %v116 = vpop.permute.xlu0 %115
    %117 = vrot.lane.b32.xlu0 %v94, 96
    %v118 = vpop.permute.xlu0 %117
    %vm119 = vcmask 785408
    %v120 = vsel %vm119, %v114, %v116
    %v121 = vsel %vm119, %v116, %v118
    %v125 = vmax.f32 %v110, %v120
    %v126 = vmax.f32 %v111, %v121
    %v127 = vmax.f32 %v112, %v118
    %131 = vrot.lane.b32.xlu0 %v125, 127
    %v132 = vpop.permute.xlu0 %131
    %133 = vrot.lane.b32.xlu0 %v126, 127
    %v134 = vpop.permute.xlu0 %133
    %135 = vrot.lane.b32.xlu0 %v127, 127
    %v136 = vpop.permute.xlu0 %135
    %vm137 = vcmask 1039360
    %v138 = vsel %vm137, %v132, %v134
    %v139 = vsel %vm137, %v134, %v136
    %v142 = vmax.f32 %v125, %v138
    %v143 = vmax.f32 %v126, %v139
    %144 = vrot.lane.b32.xlu0 %v125, 126
    %v145 = vpop.permute.xlu0 %144
    %146 = vrot.lane.b32.xlu0 %v126, 126
    %v147 = vpop.permute.xlu0 %146
    %148 = vrot.lane.b32.xlu0 %v127, 126
    %v149 = vpop.permute.xlu0 %148
    %vm150 = vcmask 1031168
    %v151 = vsel %vm150, %v145, %v147
    %v152 = vsel %vm150, %v147, %v149
    %v155 = vmax.f32 %v142, %v151
    %v156 = vmax.f32 %v143, %v152
    %v157 = vadd.f32 %v155, %v156
    %158 = vadd.xlane.f32.xlu0 %v157
    %v159 = vpop.xlane.xlu0 %158
    %v160 = vsub.f32 256.0, %v159
    %vm161 = vcmp.lt.s32.totalorder %v28, 8
    %v162 = vsel %vm161, %v160, 0.0
    %vm163 = vcmask 7168
    %v164 = vsel %vm163, %v162, 0.0
    %165 = vadd.xlane.f32.xlu0 %v164
    %v166 = vpop.xlane.xlu0 %165
    %v167 = vrot.slane %v166, 4
    %v168 = vadd.f32 %v166, %v167
    %v169 = vrot.slane %v168, 2
    %v170 = vadd.f32 %v168, %v169
    %v171 = vrot.slane %v170, 1
    %v172 = vadd.f32 %v170, %v171
    %s173 = vtos %v172
    %v174 = vstv %s173
    %175 = vst [vmem:[#allocation5] sm:$0xff] %v174
    // Predicated region
    $region10: #{tpu_custom_call.1} parent=1 // pred_check
      _
    $region11: #{tpu_custom_call.1} parent=1 // pred_check_branch
      %177 = sbr.rel (0) target = $region13
    $region12: #{tpu_custom_call.1} parent=1 // pred_region
      %s179 = ssub.s32 128, 128
      %180 = vsyncadd [#allocation4], %s179
      %s182 = sshll.u32 [#allocation5], 4
      %s183 = int_to_ptr.vmem [resolvable:$true] %s182
      %185 = dma.vmem_to_hbm [thread:$0]  %s183, 128, %s1, [#allocation4]
    $region13: #{tpu_custom_call.1} parent=1 // pred_fallthru
      _
    // Predicated region
    $region14: #{tpu_custom_call.1} parent=1 // pred_check
      _
    $region15: #{tpu_custom_call.1} parent=1 // pred_check_branch
      %187 = sbr.rel (0) target = $region17
    $region16: #{tpu_custom_call.1} parent=1 // pred_region
      %188 = dma.done [#allocation4], 128
    $region17: #{tpu_custom_call.1} parent=1 // pred_fallthru
      _
    %189 = vsyncpa [#allocation3], 1
    %190 = vsyncpa [#allocation4], 1

</llo_original>
